<compile_context>
chip_gen: v6e
topology: v6e:2x2x1
jax: 0.10.0
libtpu: 0.0.40
codegen_flags: <defaults>
</compile_context>

<pallas_src>
import functools
import math

import jax
import jax.numpy as jnp
from jax.experimental import pallas as pl
from jax.experimental.pallas import tpu as pltpu


_VMEM_LIMIT = 48 * 1024 * 1024   # safe on v5e/v6e (128 MiB) and v7x (64 MiB)
_NEG_LARGE = -1e30               # finite stand-in for -inf in the running max


def _pick_block(dim, target, align):
    """Largest block <= target that divides `dim` and is a multiple of `align`;
    falls back to the full dim (always a legal TPU block)."""
    if dim <= target:
        return dim
    start = target - (target % align)
    for cand in range(start, 0, -align):
        if dim % cand == 0:
            return cand
    return dim


# ------------------------- tiled linear projection ------------------------- #

def _linear_kernel(x_ref, w_ref, b_ref, o_ref, acc_ref):
    # One (tm, tn) output tile, accumulated over the K grid axis in f32.
    kk = pl.program_id(2)

    @pl.when(kk == 0)
    def _():
        acc_ref[...] = jnp.zeros_like(acc_ref)

    acc_ref[...] += jnp.dot(x_ref[...], w_ref[...],
                            preferred_element_type=jnp.float32)

    @pl.when(kk == pl.num_programs(2) - 1)
    def _():
        o_ref[...] = (acc_ref[...] + b_ref[...].astype(jnp.float32)
                      ).astype(o_ref.dtype)


def linear(x, w, b, *, tm=512, tn=512, tk=512):
    """y = x @ w + b with a tiled, double-buffered Pallas kernel.

    x: (N, Din), w: (Din, Dout), b: (1, Dout) -> (N, Dout).
    """
    n, din = x.shape
    dout = w.shape[1]
    tm = _pick_block(n, tm, 8)        # sublane dim of x / out
    tn = _pick_block(dout, tn, 128)   # lane dim of w / out
    tk = _pick_block(din, tk, 128)    # lane dim of x, sublane dim of w
    grid = (n // tm, dout // tn, din // tk)

    itemsize = jnp.dtype(x.dtype).itemsize
    cost = pl.CostEstimate(
        flops=2 * n * din * dout,
        transcendentals=0,
        bytes_accessed=itemsize * (n * din + din * dout + n * dout + dout))

    return pl.pallas_call(
        _linear_kernel,
        out_shape=jax.ShapeDtypeStruct((n, dout), x.dtype),
        grid=grid,
        in_specs=[
            pl.BlockSpec((tm, tk), lambda i, j, kk: (i, kk)),
            pl.BlockSpec((tk, tn), lambda i, j, kk: (kk, j)),
            pl.BlockSpec((1, tn), lambda i, j, kk: (0, j)),
        ],
        out_specs=pl.BlockSpec((tm, tn), lambda i, j, kk: (i, j)),
        scratch_shapes=[pltpu.VMEM((tm, tn), jnp.float32)],
        compiler_params=pltpu.CompilerParams(
            dimension_semantics=("parallel", "parallel", "arbitrary"),
            vmem_limit_bytes=_VMEM_LIMIT),
        cost_estimate=cost,
    )(x, w, b)


# ----------------------- flash-style attention core ------------------------ #

def _flash_attn_kernel(*refs, num_heads, has_mask):
    if has_mask:
        q_ref, k_ref, v_ref, mask_ref, o_ref, m_sc, l_sc, acc_sc = refs
    else:
        q_ref, k_ref, v_ref, o_ref, m_sc, l_sc, acc_sc = refs
        mask_ref = None

    kv_idx = pl.program_id(2)

    @pl.when(kv_idx == 0)
    def _():
        # Finite "-inf" keeps exp(m_prev - m_new) NaN-free even when an entire
        # kv block of a row is masked out.
        m_sc[...] = jnp.full_like(m_sc, _NEG_LARGE)
        l_sc[...] = jnp.zeros_like(l_sc)
        acc_sc[...] = jnp.zeros_like(acc_sc)

    mask = mask_ref[...] if has_mask else None    # (tq, tkv), shared by all heads

    # All heads of this batch element are processed per grid step (static
    # unroll): Q/K/V are DMA'd once per step for every head, which amortizes
    # the per-step overhead and keeps the DMA blocks large.
    for h in range(num_heads):
        q_h = q_ref[:, h, :].astype(jnp.float32)  # (tq, hd); scaling folded in W_q
        k_h = k_ref[:, h, :].astype(jnp.float32)  # (tkv, hd)
        v_h = v_ref[:, h, :]                      # (tkv, hd)

        # q @ k^T via dot_general — no materialized transpose of the K tile.
        s = jax.lax.dot_general(
            q_h, k_h, (((1,), (1,)), ((), ())),
            preferred_element_type=jnp.float32)   # (tq, tkv)
        if has_mask:
            s = s + mask

        m_prev = m_sc[h]
        m_new = jnp.maximum(m_prev, jnp.max(s, axis=-1, keepdims=True))
        alpha = jnp.exp(m_prev - m_new)
        p = jnp.exp(s - m_new)
        l_sc[h] = alpha * l_sc[h] + jnp.sum(p, axis=-1, keepdims=True)
        pv = jax.lax.dot_general(
            p.astype(v_h.dtype), v_h, (((1,), (0,)), ((), ())),
            preferred_element_type=jnp.float32)   # (tq, hd)
        acc_sc[h] = alpha * acc_sc[h] + pv
        m_sc[h] = m_new

    @pl.when(kv_idx == pl.num_programs(2) - 1)
    def _():
        for h in range(num_heads):
            inv = pl.reciprocal(l_sc[h], approx=True)
            o_ref[:, h, :] = (acc_sc[h] * inv).astype(o_ref.dtype)


def attention_core(q, k, v, mask=None, *, tq=128, tkv=256):
    """Flash-style MHA over the native (T|S, B, H, hd) layouts.

    q: (T, B, H, hd), k/v: (S, B, H, hd), mask: (B, T, S) additive f32 or None.
    Returns (T, B, H, hd).
    """
    T, B, H, hd = q.shape
    S = k.shape[0]
    tq = _pick_block(T, tq, 8)       # sublane dim of the mask block
    tkv = _pick_block(S, tkv, 128)   # lane dim of the mask / score tiles
    grid = (B, T // tq, S // tkv)
    has_mask = mask is not None

    in_specs = [
        pl.BlockSpec((tq, None, H, hd), lambda b, ti, ki: (ti, b, 0, 0)),
        pl.BlockSpec((tkv, None, H, hd), lambda b, ti, ki: (ki, b, 0, 0)),
        pl.BlockSpec((tkv, None, H, hd), lambda b, ti, ki: (ki, b, 0, 0)),
    ]
    args = [q, k, v]
    if has_mask:
        in_specs.append(
            pl.BlockSpec((None, tq, tkv), lambda b, ti, ki: (b, ti, ki)))
        args.append(mask)

    itemsize = jnp.dtype(q.dtype).itemsize
    cost = pl.CostEstimate(
        flops=4 * B * H * T * S * hd,
        transcendentals=B * H * T * S,
        bytes_accessed=itemsize * (2 * T * B * H * hd + 2 * S * B * H * hd)
        + (4 * B * T * S if has_mask else 0))

    kernel = functools.partial(_flash_attn_kernel, num_heads=H, has_mask=has_mask)
    return pl.pallas_call(
        kernel,
        out_shape=jax.ShapeDtypeStruct((T, B, H, hd), q.dtype),
        grid=grid,
        in_specs=in_specs,
        out_specs=pl.BlockSpec((tq, None, H, hd), lambda b, ti, ki: (ti, b, 0, 0)),
        scratch_shapes=[
            pltpu.VMEM((H, tq, 1), jnp.float32),   # running max
            pltpu.VMEM((H, tq, 1), jnp.float32),   # running denominator
            pltpu.VMEM((H, tq, hd), jnp.float32),  # running numerator
        ],
        compiler_params=pltpu.CompilerParams(
            dimension_semantics=("parallel", "parallel", "arbitrary"),
            vmem_limit_bytes=_VMEM_LIMIT),
        cost_estimate=cost,
    )(*args)


# ------------------------------ module wrapper ------------------------------ #

def init_params(key, hidden_size, num_heads, q_size=None, k_size=None,
                v_size=None, output_size=None):
    q_size = q_size or hidden_size
    k_size = k_size or hidden_size
    v_size = v_size or hidden_size
    output_size = output_size or hidden_size

    gain = 1.0
    if q_size == v_size:  # mirrors the module's (buggy) `q_size == v_size == v_size`
        gain = 1.0 / math.sqrt(2.0)

    def xavier(key, out_f, in_f, g):
        bound = g * math.sqrt(6.0 / (in_f + out_f))
        w = jax.random.uniform(key, (out_f, in_f), jnp.float32, -bound, bound)
        return w.T  # store as (in, out) for x @ W

    def linear_bias(key, in_f, out_f):
        bound = 1.0 / math.sqrt(in_f)
        return jax.random.uniform(key, (1, out_f), jnp.float32, -bound, bound)

    ks = jax.random.split(key, 7)
    params = dict(
        wq=xavier(ks[0], hidden_size, q_size, gain),
        wk=xavier(ks[1], hidden_size, k_size, gain),
        wv=xavier(ks[2], hidden_size, v_size, gain),
        wo=xavier(ks[3], output_size, hidden_size, 1.0),
        bq=linear_bias(ks[4], q_size, hidden_size),
        bk=linear_bias(ks[5], k_size, hidden_size),
        bv=linear_bias(ks[6], v_size, hidden_size),
        bo=jnp.zeros((1, output_size), jnp.float32),  # nn.init.zeros_(linear_o.bias)
    )
    meta = dict(hidden_size=hidden_size, num_heads=num_heads,
                head_size=hidden_size // num_heads,
                output_size=output_size,
                scaling=(hidden_size // num_heads) ** (-0.5))
    return params, meta


def multi_head_attention(q, k, v, params, meta, mask=None):
    T, B, _ = q.shape
    S = k.shape[0]
    H = meta["num_heads"]
    hd = meta["head_size"]
    hidden = meta["hidden_size"]
    out_size = meta["output_size"]
    scaling = meta["scaling"]

    # Fold the 1/sqrt(head_size) scaling into the Q projection weights/bias
    # (weight-sized one-time transform; (xW+b)*s == x(W*s)+(b*s)).
    wq = params["wq"] * scaling
    bq = params["bq"] * scaling

    q2d = q.reshape(T * B, -1)
    if (q is k) and (k is v):
        # Self-attention: fused QKV projection -> the activation is read from
        # HBM once instead of three times, and the MXU sees a 3x wider N.
        w_qkv = jnp.concatenate([wq, params["wk"], params["wv"]], axis=1)
        b_qkv = jnp.concatenate([bq, params["bk"], params["bv"]], axis=1)
        qkv = linear(q2d, w_qkv, b_qkv)                  # (T*B, 3*hidden)
        qp = qkv[:, :hidden]
        kp = qkv[:, hidden:2 * hidden]
        vp = qkv[:, 2 * hidden:]
    else:
        qp = linear(q2d, wq, bq)
        kp = linear(k.reshape(S * B, -1), params["wk"], params["bk"])
        vp = linear(v.reshape(S * B, -1), params["wv"], params["bv"])

    # Free (contiguous) reshapes into the attention core's native layout —
    # no host-side transposes of Q/K/V or of the attention output.
    q4 = qp.reshape(T, B, H, hd)
    k4 = kp.reshape(S, B, H, hd)
    v4 = vp.reshape(S, B, H, hd)

    if mask is not None:
        if mask.dtype == jnp.bool_:
            mask = jnp.where(mask, -jnp.inf, 0.0).astype(jnp.float32)
        else:
            mask = mask.astype(jnp.float32)

    o4 = attention_core(q4, k4, v4, mask)                # (T, B, H, hd)

    o = linear(o4.reshape(T * B, hidden), params["wo"], params["bo"])
    return o.reshape(T, B, out_size)


# --------------------------- pure-JAX reference ----------------------------- #

def reference_mha(q, k, v, params, meta, mask=None):
    T, B, _ = q.shape
    S = k.shape[0]
    H = meta["num_heads"]
    hd = meta["head_size"]
    qp = (q.reshape(T * B, -1) @ params["wq"] + params["bq"]) * meta["scaling"]
    kp = k.reshape(S * B, -1) @ params["wk"] + params["bk"]
    vp = v.reshape(S * B, -1) @ params["wv"] + params["bv"]
    qh = qp.reshape(T, B, H, hd).transpose(1, 2, 0, 3)
    kh = kp.reshape(S, B, H, hd).transpose(1, 2, 0, 3)
    vh = vp.reshape(S, B, H, hd).transpose(1, 2, 0, 3)
    score = jnp.einsum("bhtd,bhsd->bhts", qh, kh)
    if mask is not None:
        score = score + mask[:, None, :, :]
    p = jax.nn.softmax(score, axis=-1)
    o = jnp.einsum("bhts,bhsd->bhtd", p, vh)
    o = o.transpose(2, 0, 1, 3).reshape(T * B, meta["hidden_size"])
    o = o @ params["wo"] + params["bo"]
    return o.reshape(T, B, meta["output_size"])


if __name__ == "__main__":
    T, S, B = 8, 8, 2
    hidden, num_heads = 32, 4

    key = jax.random.PRNGKey(0)
    kp_, kq_, kk_, kv_ = jax.random.split(key, 4)
    params, meta = init_params(kp_, hidden, num_heads)

    q = jax.random.normal(kq_, (T, B, hidden), jnp.float32)
    k = jax.random.normal(kk_, (S, B, hidden), jnp.float32)
    v = jax.random.normal(kv_, (S, B, hidden), jnp.float32)

    # Additive mask: block out the last two source positions (never a full row).
    mask = jnp.zeros((B, T, S), jnp.float32).at[:, :, -2:].set(-jnp.inf)

    # Cross-attention path with mask.
    out = jax.block_until_ready(multi_head_attention(q, k, v, params, meta, mask=mask))
    ref = reference_mha(q, k, v, params, meta, mask=mask)
    assert out.shape == (T, B, hidden), out.shape
    assert jnp.allclose(out, ref, atol=5e-3, rtol=5e-3), float(jnp.max(jnp.abs(out - ref)))

    # Mask-free path (dedicated kernel variant; no dense zero mask built/DMA'd).
    out_nm = jax.block_until_ready(multi_head_attention(q, k, v, params, meta, mask=None))
    ref_nm = reference_mha(q, k, v, params, meta, mask=None)
    assert jnp.allclose(out_nm, ref_nm, atol=5e-3, rtol=5e-3), \
        float(jnp.max(jnp.abs(out_nm - ref_nm)))

    # Self-attention path (fused QKV projection).
    out_sa = jax.block_until_ready(multi_head_attention(q, q, q, params, meta, mask=mask))
    ref_sa = reference_mha(q, q, q, params, meta, mask=mask)
    assert jnp.allclose(out_sa, ref_sa, atol=5e-3, rtol=5e-3), \
        float(jnp.max(jnp.abs(out_sa - ref_sa)))

    print("KERNEL_OK")
</pallas_src>

<mosaic_0001>
module attributes {stable_mosaic.version = 11 : i64} {
  func.func @_linear_kernel(%arg0: i32, %arg1: i32, %arg2: i32, %arg3: memref<16x32xf32, #tpu.memory_space<vmem>>, %arg4: memref<32x32xf32, #tpu.memory_space<vmem>>, %arg5: memref<1x32xf32, #tpu.memory_space<vmem>>, %arg6: memref<16x32xf32, #tpu.memory_space<vmem>>, %arg7: memref<16x32xf32, #tpu.memory_space<vmem>>) attributes {dimension_semantics = [#tpu.dimension_semantics<parallel>, #tpu.dimension_semantics<parallel>, #tpu.dimension_semantics<arbitrary>], iteration_bounds = array<i64: 1, 1, 1>, scalar_prefetch = 0 : i64, scratch_operands = 1 : i64, tpu.core_type = #tpu.core_type<tc>, window_params = [{transform_indices = @transform_0, window_bounds = array<i64: 16, 32>}, {transform_indices = @transform_1, window_bounds = array<i64: 32, 32>}, {transform_indices = @transform_2, window_bounds = array<i64: 1, 32>}, {transform_indices = @transform_3, window_bounds = array<i64: 16, 32>}]} {
    %c0_i32 = arith.constant 0 : i32
    %0 = arith.cmpi eq, %arg2, %c0_i32 : i32
    %1 = arith.extui %0 : i1 to i32
    %c0_i32_0 = arith.constant 0 : i32
    %2 = arith.cmpi ne, %1, %c0_i32_0 : i32
    scf.if %2 {
      %cst_10 = arith.constant 0.000000e+00 : f32
      %12 = vector.broadcast %cst_10 : f32 to vector<16x32xf32>
      %c0_11 = arith.constant 0 : index
      %c0_12 = arith.constant 0 : index
      %13 = vector.load %arg7[%c0_11, %c0_12] : memref<16x32xf32, #tpu.memory_space<vmem>>, vector<16x32xf32>
      tpu.vector_store %arg7[%c0_11, %c0_12], %12 {strides = array<i32>} : memref<16x32xf32, #tpu.memory_space<vmem>>, vector<16x32xf32>,
    } else {
    }
    %c0 = arith.constant 0 : index
    %c0_1 = arith.constant 0 : index
    %3 = vector.load %arg7[%c0, %c0_1] : memref<16x32xf32, #tpu.memory_space<vmem>>, vector<16x32xf32>
    %c0_2 = arith.constant 0 : index
    %c0_3 = arith.constant 0 : index
    %4 = vector.load %arg3[%c0_2, %c0_3] : memref<16x32xf32, #tpu.memory_space<vmem>>, vector<16x32xf32>
    %c0_4 = arith.constant 0 : index
    %c0_5 = arith.constant 0 : index
    %5 = vector.load %arg4[%c0_4, %c0_5] : memref<32x32xf32, #tpu.memory_space<vmem>>, vector<32x32xf32>
    %cst = arith.constant dense<0.000000e+00> : vector<16x32xf32>
    %6 = tpu.matmul %4, %5, %cst {dimension_numbers = #tpu.dot_dimension_numbers<[1], [0], [0], [1], [0, 0, 1, 1], [], []>} : vector<16x32xf32>, vector<32x32xf32>, vector<16x32xf32> -> vector<16x32xf32>
    %7 = arith.addf %3, %6 : vector<16x32xf32>
    %c0_6 = arith.constant 0 : index
    %c0_7 = arith.constant 0 : index
    %8 = vector.load %arg7[%c0_6, %c0_7] : memref<16x32xf32, #tpu.memory_space<vmem>>, vector<16x32xf32>
    tpu.vector_store %arg7[%c0_6, %c0_7], %7 {strides = array<i32>} : memref<16x32xf32, #tpu.memory_space<vmem>>, vector<16x32xf32>,
    %c0_i32_8 = arith.constant 0 : i32
    %9 = arith.cmpi eq, %arg2, %c0_i32_8 : i32
    %10 = arith.extui %9 : i1 to i32
    %c0_i32_9 = arith.constant 0 : i32
    %11 = arith.cmpi ne, %10, %c0_i32_9 : i32
    scf.if %11 {
      %c0_10 = arith.constant 0 : index
      %c0_11 = arith.constant 0 : index
      %12 = vector.load %arg7[%c0_10, %c0_11] : memref<16x32xf32, #tpu.memory_space<vmem>>, vector<16x32xf32>
      %c0_12 = arith.constant 0 : index
      %c0_13 = arith.constant 0 : index
      %13 = vector.load %arg5[%c0_12, %c0_13] : memref<1x32xf32, #tpu.memory_space<vmem>>, vector<1x32xf32>
      %14 = vector.broadcast %13 : vector<1x32xf32> to vector<16x32xf32>
      %15 = arith.addf %12, %14 : vector<16x32xf32>
      %c0_14 = arith.constant 0 : index
      %c0_15 = arith.constant 0 : index
      %16 = vector.load %arg6[%c0_14, %c0_15] : memref<16x32xf32, #tpu.memory_space<vmem>>, vector<16x32xf32>
      tpu.vector_store %arg6[%c0_14, %c0_15], %15 {strides = array<i32>} : memref<16x32xf32, #tpu.memory_space<vmem>>, vector<16x32xf32>,
    } else {
    }
    return
  }
  func.func @transform_0(%arg0: i32, %arg1: i32, %arg2: i32) -> (i32, i32) {
    %c0_i32 = arith.constant 0 : i32
    return %arg0, %arg2 : i32, i32
  }
  func.func @transform_1(%arg0: i32, %arg1: i32, %arg2: i32) -> (i32, i32) {
    %c0_i32 = arith.constant 0 : i32
    return %arg2, %arg1 : i32, i32
  }
  func.func @transform_2(%arg0: i32, %arg1: i32, %arg2: i32) -> (i32, i32) {
    %c0_i32 = arith.constant 0 : i32
    %c0_i32_0 = arith.constant 0 : i32
    return %c0_i32, %arg1 : i32, i32
  }
  func.func @transform_3(%arg0: i32, %arg1: i32, %arg2: i32) -> (i32, i32) {
    %c0_i32 = arith.constant 0 : i32
    return %arg0, %arg1 : i32, i32
  }
}

</mosaic_0001>

<llo_original>
// kernel: tpu_custom_call.1
$region0: #{tpu_custom_call.1}
  #allocation0 [shape = 'u32[]', space=smem, size = 0x4, offset = 0x4, fixed_abs, tag = 'smem constant byte address 0x4 - core index']
  #allocation1 [shape = 'u32[144,128]{1,0:T(1,128)}', space=vmem, size = 0x12000, scoped, tag = 'internal scratch']
  #allocation2 [shape = 'f32[16,32]{1,0:T(8,128)}', space=vmem, size = 0x2000, scoped, tag = 'scratch operand']
  %s0 = inlined_call_operand.hbm [shape: f32[16,32], index: 0, kind: input, shape index: {}]
  %s1 = inlined_call_operand.hbm [shape: f32[32,32], index: 1, kind: input, shape index: {}]
  %s2 = inlined_call_operand.vmem [shape: f32[1,32], index: 2, kind: input, shape index: {}]
  %s3 = inlined_call_operand.hbm [shape: f32[16,32], index: 3, kind: output, shape index: {}]
  %s4 = sld [smem:[#allocation0]]
  $region38: #{tpu_custom_call.1} parent=0
    _
  %s6 = ssub.s32 1, %s4
  %s7 = scalar_select 0, %s6, %s4
  $region1: #{tpu_custom_call.1} parent=0
    #allocation3 [shape = 'u8[8192]{0}', space=vmem, size = 0x2000, scoped, tag = 'input window, operand 0, single buffered']
    #allocation4 [shape = 's32[1]{0}', space=sflag, size = 0x4, scoped, tag = 'scoped memory for tpu_custom_call.1']
    #allocation5 [shape = 's32[1]{0}', space=sflag, size = 0x4, scoped, tag = 'scoped memory for tpu_custom_call.1']
    #allocation6 [shape = 'u8[16384]{0}', space=vmem, size = 0x4000, scoped, tag = 'input window, operand 1, single buffered']
    #allocation7 [shape = 's32[1]{0}', space=sflag, size = 0x4, scoped, tag = 'scoped memory for tpu_custom_call.1']
    #allocation8 [shape = 'u8[8192]{0}', space=vmem, size = 0x2000, scoped, tag = 'output window, operand 0, single buffered']
    %8 = vsyncpa [#allocation4], 0
    %9 = vsyncpa [#allocation7], 0
    %10 = vsyncpa [#allocation5], 0
    // Predicated region
    $region2: #{tpu_custom_call.1} parent=1 // pred_check
      _
    $region3: #{tpu_custom_call.1} parent=1 // pred_check_branch
      %12 = sbr.rel (0) target = $region5
    $region4: #{tpu_custom_call.1} parent=1 // pred_region
      %s14 = ssub.s32 256, 256
      %15 = vsyncadd [#allocation4], %s14
      %s16 = sshll.u32 [#allocation3], 4
      %s17 = int_to_ptr.vmem [resolvable:$true] %s16
      %22 = dma.hbm_to_vmem [thread:$0]  %s0, 256, %s17, [#allocation4], 128, 128, 8
    $region5: #{tpu_custom_call.1} parent=1 // pred_fallthru
      _
    // Predicated region
    $region6: #{tpu_custom_call.1} parent=1 // pred_check
      _
    $region7: #{tpu_custom_call.1} parent=1 // pred_check_branch
      %24 = sbr.rel (0) target = $region9
    $region8: #{tpu_custom_call.1} parent=1 // pred_region
      %s26 = ssub.s32 512, 512
      %27 = vsyncadd [#allocation7], %s26
      %s28 = sshll.u32 [#allocation6], 4
      %s29 = int_to_ptr.vmem [resolvable:$true] %s28
      %34 = dma.hbm_to_vmem [thread:$0]  %s1, 512, %s29, [#allocation7], 128, 128, 8
    $region9: #{tpu_custom_call.1} parent=1 // pred_fallthru
      _
    // Predicated region
    $region10: #{tpu_custom_call.1} parent=1 // pred_check
      _
    $region11: #{tpu_custom_call.1} parent=1 // pred_check_branch
      %36 = sbr.rel (0) target = $region13
    $region12: #{tpu_custom_call.1} parent=1 // pred_region
      _
    $region13: #{tpu_custom_call.1} parent=1 // pred_fallthru
      _
    // Predicated region
    $region14: #{tpu_custom_call.1} parent=1 // pred_check
      _
    $region15: #{tpu_custom_call.1} parent=1 // pred_check_branch
      %38 = sbr.rel (0) target = $region17
    $region16: #{tpu_custom_call.1} parent=1 // pred_region
      %39 = dma.done [#allocation4], 256
    $region17: #{tpu_custom_call.1} parent=1 // pred_fallthru
      _
    // Predicated region
    $region18: #{tpu_custom_call.1} parent=1 // pred_check
      _
    $region19: #{tpu_custom_call.1} parent=1 // pred_check_branch
      %41 = sbr.rel (0) target = $region21
    $region20: #{tpu_custom_call.1} parent=1 // pred_region
      %42 = dma.done [#allocation7], 512
    $region21: #{tpu_custom_call.1} parent=1 // pred_fallthru
      _
    %p43 = scmp.eq.s32.totalorder 0, 0
    // Predicated region
    $region22: #{tpu_custom_call.1} parent=1 // pred_check
      %p44 = pneg %p43
    $region23: #{tpu_custom_call.1} parent=1 // pred_check_branch
      %46 = sbr.rel (%p44) target = $region25
    $region24: #{tpu_custom_call.1} parent=1 // pred_region
      %vm47 = vcmask 261120
      %48 = vst.msk [vmem:[#allocation2] sm:$0xff] %vm47, 0.0
      %49 = vst.msk [vmem:[#allocation2 + $0x8] sm:$0xff] %vm47, 0.0
    $region25: #{tpu_custom_call.1} parent=1 // pred_fallthru
      _
    %v50 = vld [vmem:[#allocation2] sm:$0xff]
    %v51 = vld [vmem:[#allocation2 + $0x8] sm:$0xff]
    %v52 = vld [vmem:[#allocation3] sm:$0xff]
    %v53 = vld [vmem:[#allocation3 + $0x8] sm:$0xff]
    %v54 = vld [vmem:[#allocation6] sm:$0xff]
    %v55 = vld [vmem:[#allocation6 + $0x8] sm:$0xff]
    %v56 = vld [vmem:[#allocation6 + $0x10] sm:$0xff]
    %v57 = vld [vmem:[#allocation6 + $0x18] sm:$0xff]
    %vm58 = vcmask 261120
    %v60 = vsel %vm58, %v52, 0
    %v63 = vsel %vm58, %v53, 0
    %65 = vmatprep.subr.mxu0 0.0
    %66 = vmatpush1.msra.mxu0 0.0
    %67 = vmatprep.subr.mxu0 0.0
    %68 = vmatpush1.msra.mxu0 0.0
    %69 = vmatprep.subr.mxu0 0.0
    %70 = vmatpush1.msra.mxu0 0.0
    %71 = vmatprep.subr.mxu0 0.0
    %72 = vmatpush1.msra.mxu0 0.0
    %73 = vmatprep.subr.mxu0 0.0
    %74 = vmatpush1.msra.mxu0 0.0
    %75 = vmatprep.subr.mxu0 0.0
    %76 = vmatpush1.msra.mxu0 0.0
    %77 = vmatprep.subr.mxu0 0.0
    %78 = vmatpush1.msra.mxu0 0.0
    %79 = vmatprep.subr.mxu0 0.0
    %80 = vmatpush1.msra.mxu0 0.0
    %81 = vmatprep.subr.mxu0 0.0
    %82 = vmatpush1.msra.mxu0 0.0
    %83 = vmatprep.subr.mxu0 0.0
    %84 = vmatpush1.msra.mxu0 0.0
    %85 = vmatprep.subr.mxu0 0.0
    %86 = vmatpush1.msra.mxu0 0.0
    %87 = vmatprep.subr.mxu0 0.0
    %88 = vmatpush1.msra.mxu0 0.0
    %89 = vmatprep.subr.mxu0 0.0
    %90 = vmatpush1.msra.mxu0 %v57
    %91 = vmatprep.subr.mxu0 0.0
    %92 = vmatpush1.msra.mxu0 %v56
    %93 = vmatprep.subr.mxu0 0.0
    %94 = vmatpush1.msra.mxu0 %v55
    %95 = vmatprep.subr.mxu0 0.0
    %96 = vmatpush1.msra.mxu0 %v54
    %97 = vmatprep.subr.mxu0 0.0
    %98 = vmatpush2.msra.mxu0 0.0
    %99 = vmatprep.subr.mxu0 0.0
    %100 = vmatpush2.msra.mxu0 0.0
    %101 = vmatprep.subr.mxu0 0.0
    %102 = vmatpush2.msra.mxu0 0.0
    %103 = vmatprep.subr.mxu0 0.0
    %104 = vmatpush2.msra.mxu0 0.0
    %105 = vmatprep.subr.mxu0 0.0
    %106 = vmatpush2.msra.mxu0 0.0
    %107 = vmatprep.subr.mxu0 0.0
    %108 = vmatpush2.msra.mxu0 0.0
    %109 = vmatprep.subr.mxu0 0.0
    %110 = vmatpush2.msra.mxu0 0.0
    %111 = vmatprep.subr.mxu0 0.0
    %112 = vmatpush2.msra.mxu0 0.0
    %113 = vmatprep.subr.mxu0 0.0
    %114 = vmatpush2.msra.mxu0 0.0
    %115 = vmatprep.subr.mxu0 0.0
    %116 = vmatpush2.msra.mxu0 0.0
    %117 = vmatprep.subr.mxu0 0.0
    %118 = vmatpush2.msra.mxu0 0.0
    %119 = vmatprep.subr.mxu0 0.0
    %120 = vmatpush2.msra.mxu0 0.0
    %121 = vmatprep.subr.mxu0 0.0
    %122 = vmatpush2.msra.mxu0 0.0
    %123 = vmatprep.subr.mxu0 0.0
    %124 = vmatpush2.msra.mxu0 0.0
    %125 = vmatprep.subr.mxu0 0.0
    %126 = vmatpush2.msra.mxu0 0.0
    %127 = vmatprep.subr.mxu0 0.0
    %128 = vmatpush2.msra.mxu0 0.0
    %129 = vmatprep.mubr.f32.mxu0 0.0
    %130 = vmatmul.mubr.f32.gmra.mxu0 %v60
    %v131 = vpop.f32.mrf.mxu0
    %v132 = vadd.f32 0.0, %v131
    %v133 = vpop.f32.mrf.mxu0
    %134 = vmatprep.mubr.f32.mxu0 0.0
    %135 = vmatmul.mubr.f32.gmra.mxu0 %v63
    %v136 = vpop.f32.mrf.mxu0
    %v137 = vadd.f32 0.0, %v136
    %v138 = vpop.f32.mrf.mxu0
    %139 = vdwg.mxu0
    %v140 = vadd.f32 %v50, %v132
    %v141 = vadd.f32 %v51, %v137
    %142 = vst.msk [vmem:[#allocation2] sm:$0xff] %vm58, %v140
    %143 = vst.msk [vmem:[#allocation2 + $0x8] sm:$0xff] %vm58, %v141
    // Predicated region
    $region26: #{tpu_custom_call.1} parent=1 // pred_check
      %p144 = pneg %p43
    $region27: #{tpu_custom_call.1} parent=1 // pred_check_branch
      %146 = sbr.rel (%p144) target = $region29
    $region28: #{tpu_custom_call.1} parent=1 // pred_region
      %v147 = vld [vmem:[#allocation2] sm:$0xff]
      %v148 = vld [vmem:[#allocation2 + $0x8] sm:$0xff]
      %v149 = vld [vmem:[%s2] sm:$0x1]
      %v151 = vlaneseq
      %v152 = vshrl.u32 %v151, 7
      %v153 = vsub.s32 0, %v152
      %v154 = vrot.slane %v149, %v153
      %v156 = vadd.f32 %v147, %v154
      %v157 = vadd.f32 %v148, %v154
      %158 = vst.msk [vmem:[#allocation8] sm:$0xff] %vm58, %v156
      %159 = vst.msk [vmem:[#allocation8 + $0x8] sm:$0xff] %vm58, %v157
    $region29: #{tpu_custom_call.1} parent=1 // pred_fallthru
      _
    // Predicated region
    $region30: #{tpu_custom_call.1} parent=1 // pred_check
      _
    $region31: #{tpu_custom_call.1} parent=1 // pred_check_branch
      %161 = sbr.rel (0) target = $region33
    $region32: #{tpu_custom_call.1} parent=1 // pred_region
      %s163 = ssub.s32 256, 256
      %164 = vsyncadd [#allocation5], %s163
      %s165 = sshll.u32 [#allocation8], 4
      %s166 = int_to_ptr.vmem [resolvable:$true] %s165
      %171 = dma.vmem_to_hbm [thread:$0]  %s166, 256, %s3, [#allocation5], 128, 128, 8
    $region33: #{tpu_custom_call.1} parent=1 // pred_fallthru
      _
    // Predicated region
    $region34: #{tpu_custom_call.1} parent=1 // pred_check
      _
    $region35: #{tpu_custom_call.1} parent=1 // pred_check_branch
      %173 = sbr.rel (0) target = $region37
    $region36: #{tpu_custom_call.1} parent=1 // pred_region
      %174 = dma.done [#allocation5], 256
    $region37: #{tpu_custom_call.1} parent=1 // pred_fallthru
      _
    %175 = vsyncpa [#allocation4], 1
    %176 = vsyncpa [#allocation7], 1
    %177 = vsyncpa [#allocation5], 1

</llo_original>
